<compile_context>
chip_gen: v5e
topology: v5e:2x2
jax: 0.10.0
libtpu: 0.0.40
codegen_flags: <defaults>
</compile_context>

<pallas_src>
import functools

import jax
import jax.numpy as jnp
from jax.experimental import pallas as pl
from jax.experimental.pallas import tpu as pltpu

_NEG = -1.0e30  # "minus infinity" that stays finite through max/exp (bf16-safe)


def _round_up(v, m):
    return (v + m - 1) // m * m


def _ce_kernel(x_ref, label_ref, out_ref, m_run, s_run, t_run, *,
               n_true, c_true, tile_n, tile_c, ragged_n, ragged_c):
    i = pl.program_id(0)               # row-tile index   ("parallel")
    j = pl.program_id(1)               # class-tile index ("arbitrary", innermost)
    nj = pl.num_programs(1)

    @pl.when(j == 0)
    def _init():
        m_run[...] = jnp.full_like(m_run, _NEG)
        s_run[...] = jnp.zeros_like(s_run)
        t_run[...] = jnp.zeros_like(t_run)

    x = x_ref[...].astype(jnp.float32)                     # (TILE_N, TILE_C) f32
    col = jax.lax.broadcasted_iota(jnp.int32, x.shape, 1)  # tile-local lane index

    if ragged_c:
        # Mask the out-of-range columns of the ragged last class tile with
        # _NEG BEFORE the max / exp-sum so undefined VMEM padding can never
        # poison the online logsumexp of real rows.  (Identity on full tiles.)
        x = jnp.where(col < (c_true - j * tile_c), x, _NEG)

    # Target logit: shift labels into tile-local coords ((TILE_N,1) scalar op)
    # and compare against the plain lane iota -- no per-element index add.
    labels_local = label_ref[...] - j * tile_c             # (TILE_N, 1) int32
    t_run[...] += jnp.sum(jnp.where(col == labels_local, x, 0.0),
                          axis=-1, keepdims=True)

    # Online logsumexp over the streamed class axis.
    m_new = jnp.maximum(m_run[...], jnp.max(x, axis=-1, keepdims=True))
    s_run[...] = s_run[...] * jnp.exp(m_run[...] - m_new) + jnp.sum(
        jnp.exp(x - m_new), axis=-1, keepdims=True)
    m_run[...] = m_new

    @pl.when(j == nj - 1)
    def _finalize():
        lse = m_run[...] + jnp.log(s_run[...])             # (TILE_N, 1)
        per_sample = lse - t_run[...]                      # (TILE_N, 1)
        if ragged_n:
            # Drop rows that belong to the ragged last row tile.
            row = (jax.lax.broadcasted_iota(jnp.int32, per_sample.shape, 0)
                   + i * tile_n)
            per_sample = jnp.where(row < n_true, per_sample, 0.0)
        # Lane-dense (8,128) partial-sum block per row tile; mean is finished
        # in the wrapper so the row axis has no cross-step output dependency.
        out_ref[...] = jnp.full(out_ref.shape, jnp.sum(per_sample),
                                dtype=jnp.float32)


def entropy_loss(x, label, *, tile_n=256, tile_c=8192):
    """Mean cross-entropy of logits x (N, C) w.r.t. integer labels (N,)."""
    n, c = x.shape
    itemsize = jnp.dtype(x.dtype).itemsize

    # Per-generation VMEM budget (v5e/v6e: 128 MiB, v7x: 64 MiB per TC).
    try:
        vmem_cap = int(pltpu.get_tpu_info().vmem_capacity_bytes)
    except Exception:  # conservative fallback if the query is unavailable
        vmem_cap = 64 * 1024 * 1024
    vmem_limit = min(vmem_cap * 3 // 4, 96 * 1024 * 1024)
    max_block_bytes = vmem_limit // 6        # x is double-buffered by Pallas

    # Row tile: multiple of 8 sublanes, never larger than the padded batch.
    tile_n = max(8, min(_round_up(tile_n, 8), _round_up(n, 8)))

    # Class tile: full C if it fits in one block (full-dim blocks are always
    # layout-legal), otherwise stream 128-lane-aligned chunks through the
    # online LSE.  Cap the block so the double buffer fits the VMEM budget.
    tile_c_eff = min(tile_c, c)
    if tile_c_eff < c:
        tile_c_eff = _round_up(tile_c_eff, 128)
    while (tile_n * tile_c_eff * itemsize > max_block_bytes
           and tile_c_eff > 128 and c > 128):
        tile_c_eff = max(128, _round_up(tile_c_eff // 2, 128))

    row_tiles = pl.cdiv(n, tile_n)
    class_tiles = pl.cdiv(c, tile_c_eff)
    ragged_n = (n % tile_n) != 0
    ragged_c = (c % tile_c_eff) != 0

    label_2d = label.astype(jnp.int32).reshape(n, 1)

    kernel = functools.partial(
        _ce_kernel, n_true=n, c_true=c, tile_n=tile_n, tile_c=tile_c_eff,
        ragged_n=ragged_n, ragged_c=ragged_c)

    partials = pl.pallas_call(
        kernel,
        out_shape=jax.ShapeDtypeStruct((row_tiles, 8, 128), jnp.float32),
        grid_spec=pltpu.PrefetchScalarGridSpec(
            num_scalar_prefetch=0,
            grid=(row_tiles, class_tiles),
            in_specs=[
                pl.BlockSpec((tile_n, tile_c_eff), lambda i, j: (i, j)),
                pl.BlockSpec((tile_n, 1), lambda i, j: (i, 0)),
            ],
            out_specs=pl.BlockSpec((1, 8, 128), lambda i, j: (i, 0, 0)),
            scratch_shapes=[pltpu.VMEM((tile_n, 1), jnp.float32)] * 3,
        ),
        compiler_params=pltpu.CompilerParams(
            dimension_semantics=("parallel", "arbitrary"),
            vmem_limit_bytes=vmem_limit,
        ),
    )(x, label_2d)

    # Per-row-tile partial sums -> mean over the true batch size.
    return jnp.sum(partials[:, 0, 0]) / n


if __name__ == "__main__":
    key = jax.random.PRNGKey(0)
    kx, kl, kx2, kl2, kx3, kl3 = jax.random.split(key, 6)

    def _ref_loss(x, label):
        n = x.shape[0]
        xf = x.astype(jnp.float32)
        return jnp.mean(jax.nn.logsumexp(xf, axis=-1)
                        - xf[jnp.arange(n), label])

    # Small shape consistent with the module: batch=8, num_classes=32.
    N, C = 8, 32
    x = jax.random.normal(kx, (N, C), dtype=jnp.float32)
    label = jax.random.randint(kl, (N,), 0, C, dtype=jnp.int32)
    loss = entropy_loss(x, label)
    jax.block_until_ready(loss)
    assert jnp.allclose(loss, _ref_loss(x, label), atol=1e-4, rtol=1e-4), (
        loss, _ref_loss(x, label))

    # Ragged row tile + streamed ragged class axis (in-kernel masking path).
    N2, C2 = 20, 300
    x2 = jax.random.normal(kx2, (N2, C2), dtype=jnp.float32)
    label2 = jax.random.randint(kl2, (N2,), 0, C2, dtype=jnp.int32)
    loss2 = entropy_loss(x2, label2, tile_n=8, tile_c=128)
    jax.block_until_ready(loss2)
    assert jnp.allclose(loss2, _ref_loss(x2, label2), atol=1e-4, rtol=1e-4), (
        loss2, _ref_loss(x2, label2))

    # bf16 logits stay bf16 in HBM; kernel upcasts per tile.
    N3, C3 = 16, 200
    x3 = jax.random.normal(kx3, (N3, C3), dtype=jnp.float32).astype(jnp.bfloat16)
    label3 = jax.random.randint(kl3, (N3,), 0, C3, dtype=jnp.int32)
    loss3 = entropy_loss(x3, label3, tile_n=8, tile_c=128)
    jax.block_until_ready(loss3)
    assert jnp.allclose(loss3, _ref_loss(x3, label3), atol=2e-3, rtol=2e-3), (
        loss3, _ref_loss(x3, label3))

    print("KERNEL_OK")
</pallas_src>

<mosaic_0001>
module attributes {stable_mosaic.version = 11 : i64} {
  func.func @_ce_kernel(%arg0: i32, %arg1: i32, %arg2: memref<8x32xf32, #tpu.memory_space<vmem>>, %arg3: memref<8x1xi32, #tpu.memory_space<vmem>>, %arg4: memref<1x8x128xf32, #tpu.memory_space<vmem>>, %arg5: memref<8x1xf32, #tpu.memory_space<vmem>>, %arg6: memref<8x1xf32, #tpu.memory_space<vmem>>, %arg7: memref<8x1xf32, #tpu.memory_space<vmem>>) attributes {dimension_semantics = [#tpu.dimension_semantics<parallel>, #tpu.dimension_semantics<arbitrary>], iteration_bounds = array<i64: 1, 1>, scalar_prefetch = 0 : i64, scratch_operands = 3 : i64, tpu.core_type = #tpu.core_type<tc>, window_params = [{transform_indices = @transform_0, window_bounds = array<i64: 8, 32>}, {transform_indices = @transform_1, window_bounds = array<i64: 8, 1>}, {transform_indices = @transform_2, window_bounds = array<i64: 1, 8, 128>}]} {
    %c0_i32 = arith.constant 0 : i32
    %0 = arith.cmpi eq, %arg1, %c0_i32 : i32
    %1 = arith.extui %0 : i1 to i32
    %c0_i32_0 = arith.constant 0 : i32
    %2 = arith.cmpi ne, %1, %c0_i32_0 : i32
    scf.if %2 {
      %cst_23 = arith.constant -1.000000e+30 : f32
      %38 = vector.broadcast %cst_23 : f32 to vector<8x1xf32>
      %c0_24 = arith.constant 0 : index
      %c0_25 = arith.constant 0 : index
      %39 = vector.load %arg5[%c0_24, %c0_25] : memref<8x1xf32, #tpu.memory_space<vmem>>, vector<8x1xf32>
      tpu.vector_store %arg5[%c0_24, %c0_25], %38 {strides = array<i32>} : memref<8x1xf32, #tpu.memory_space<vmem>>, vector<8x1xf32>,
      %cst_26 = arith.constant 0.000000e+00 : f32
      %40 = vector.broadcast %cst_26 : f32 to vector<8x1xf32>
      %c0_27 = arith.constant 0 : index
      %c0_28 = arith.constant 0 : index
      %41 = vector.load %arg6[%c0_27, %c0_28] : memref<8x1xf32, #tpu.memory_space<vmem>>, vector<8x1xf32>
      tpu.vector_store %arg6[%c0_27, %c0_28], %40 {strides = array<i32>} : memref<8x1xf32, #tpu.memory_space<vmem>>, vector<8x1xf32>,
      %cst_29 = arith.constant 0.000000e+00 : f32
      %42 = vector.broadcast %cst_29 : f32 to vector<8x1xf32>
      %c0_30 = arith.constant 0 : index
      %c0_31 = arith.constant 0 : index
      %43 = vector.load %arg7[%c0_30, %c0_31] : memref<8x1xf32, #tpu.memory_space<vmem>>, vector<8x1xf32>
      tpu.vector_store %arg7[%c0_30, %c0_31], %42 {strides = array<i32>} : memref<8x1xf32, #tpu.memory_space<vmem>>, vector<8x1xf32>,
    } else {
    }
    %c0 = arith.constant 0 : index
    %c0_1 = arith.constant 0 : index
    %3 = vector.load %arg2[%c0, %c0_1] : memref<8x32xf32, #tpu.memory_space<vmem>>, vector<8x32xf32>
    %4 = tpu.iota {dimensions = array<i32: 1>} : vector<8x32xi32>
    %c0_2 = arith.constant 0 : index
    %c0_3 = arith.constant 0 : index
    %5 = vector.load %arg3[%c0_2, %c0_3] : memref<8x1xi32, #tpu.memory_space<vmem>>, vector<8x1xi32>
    %c32_i32 = arith.constant 32 : i32
    %6 = arith.muli %arg1, %c32_i32 : i32
    %7 = vector.broadcast %6 : i32 to vector<8x1xi32>
    %8 = arith.subi %5, %7 : vector<8x1xi32>
    %c0_4 = arith.constant 0 : index
    %c0_5 = arith.constant 0 : index
    %9 = vector.load %arg7[%c0_4, %c0_5] : memref<8x1xf32, #tpu.memory_space<vmem>>, vector<8x1xf32>
    %10 = vector.broadcast %8 : vector<8x1xi32> to vector<8x32xi32>
    %11 = arith.cmpi eq, %4, %10 : vector<8x32xi32>
    %cst = arith.constant 0.000000e+00 : f32
    %12 = vector.broadcast %cst : f32 to vector<8x32xf32>
    %13 = arith.select %11, %3, %12 : vector<8x32xi1>, vector<8x32xf32>
    %cst_6 = arith.constant dense<0.000000e+00> : vector<8xf32>
    %14 = vector.multi_reduction <add>, %13, %cst_6 [1] : vector<8x32xf32> to vector<8xf32>
    %15 = vector.shape_cast %14 : vector<8xf32> to vector<8x1xf32>
    %16 = arith.addf %9, %15 : vector<8x1xf32>
    %c0_7 = arith.constant 0 : index
    %c0_8 = arith.constant 0 : index
    %17 = vector.load %arg7[%c0_7, %c0_8] : memref<8x1xf32, #tpu.memory_space<vmem>>, vector<8x1xf32>
    tpu.vector_store %arg7[%c0_7, %c0_8], %16 {strides = array<i32>} : memref<8x1xf32, #tpu.memory_space<vmem>>, vector<8x1xf32>,
    %c0_9 = arith.constant 0 : index
    %c0_10 = arith.constant 0 : index
    %18 = vector.load %arg5[%c0_9, %c0_10] : memref<8x1xf32, #tpu.memory_space<vmem>>, vector<8x1xf32>
    %cst_11 = arith.constant dense<0xFF800000> : vector<8xf32>
    %19 = vector.multi_reduction <maximumf>, %3, %cst_11 [1] : vector<8x32xf32> to vector<8xf32>
    %20 = vector.shape_cast %19 : vector<8xf32> to vector<8x1xf32>
    %21 = arith.maximumf %18, %20 : vector<8x1xf32>
    %c0_12 = arith.constant 0 : index
    %c0_13 = arith.constant 0 : index
    %22 = vector.load %arg6[%c0_12, %c0_13] : memref<8x1xf32, #tpu.memory_space<vmem>>, vector<8x1xf32>
    %c0_14 = arith.constant 0 : index
    %c0_15 = arith.constant 0 : index
    %23 = vector.load %arg5[%c0_14, %c0_15] : memref<8x1xf32, #tpu.memory_space<vmem>>, vector<8x1xf32>
    %24 = arith.subf %23, %21 : vector<8x1xf32>
    %25 = math.exp %24 : vector<8x1xf32>
    %26 = arith.mulf %22, %25 : vector<8x1xf32>
    %27 = vector.broadcast %21 : vector<8x1xf32> to vector<8x32xf32>
    %28 = arith.subf %3, %27 : vector<8x32xf32>
    %29 = math.exp %28 : vector<8x32xf32>
    %cst_16 = arith.constant dense<0.000000e+00> : vector<8xf32>
    %30 = vector.multi_reduction <add>, %29, %cst_16 [1] : vector<8x32xf32> to vector<8xf32>
    %31 = vector.shape_cast %30 : vector<8xf32> to vector<8x1xf32>
    %32 = arith.addf %26, %31 : vector<8x1xf32>
    %c0_17 = arith.constant 0 : index
    %c0_18 = arith.constant 0 : index
    %33 = vector.load %arg6[%c0_17, %c0_18] : memref<8x1xf32, #tpu.memory_space<vmem>>, vector<8x1xf32>
    tpu.vector_store %arg6[%c0_17, %c0_18], %32 {strides = array<i32>} : memref<8x1xf32, #tpu.memory_space<vmem>>, vector<8x1xf32>,
    %c0_19 = arith.constant 0 : index
    %c0_20 = arith.constant 0 : index
    %34 = vector.load %arg5[%c0_19, %c0_20] : memref<8x1xf32, #tpu.memory_space<vmem>>, vector<8x1xf32>
    tpu.vector_store %arg5[%c0_19, %c0_20], %21 {strides = array<i32>} : memref<8x1xf32, #tpu.memory_space<vmem>>, vector<8x1xf32>,
    %c0_i32_21 = arith.constant 0 : i32
    %35 = arith.cmpi eq, %arg1, %c0_i32_21 : i32
    %36 = arith.extui %35 : i1 to i32
    %c0_i32_22 = arith.constant 0 : i32
    %37 = arith.cmpi ne, %36, %c0_i32_22 : i32
    scf.if %37 {
      %c0_23 = arith.constant 0 : index
      %c0_24 = arith.constant 0 : index
      %38 = vector.load %arg5[%c0_23, %c0_24] : memref<8x1xf32, #tpu.memory_space<vmem>>, vector<8x1xf32>
      %c0_25 = arith.constant 0 : index
      %c0_26 = arith.constant 0 : index
      %39 = vector.load %arg6[%c0_25, %c0_26] : memref<8x1xf32, #tpu.memory_space<vmem>>, vector<8x1xf32>
      %40 = math.log %39 : vector<8x1xf32>
      %41 = arith.addf %38, %40 : vector<8x1xf32>
      %c0_27 = arith.constant 0 : index
      %c0_28 = arith.constant 0 : index
      %42 = vector.load %arg7[%c0_27, %c0_28] : memref<8x1xf32, #tpu.memory_space<vmem>>, vector<8x1xf32>
      %43 = arith.subf %41, %42 : vector<8x1xf32>
      %44 = vector.shape_cast %43 : vector<8x1xf32> to vector<1x8x1xf32>
      %cst_29 = arith.constant dense<0.000000e+00> : vector<1xf32>
      %45 = vector.multi_reduction <add>, %44, %cst_29 [1, 2] : vector<1x8x1xf32> to vector<1xf32>
      %46 = vector.shape_cast %45 : vector<1xf32> to vector<1x1x1xf32>
      %47 = vector.extract %46[0, 0, 0] : f32 from vector<1x1x1xf32>
      %48 = vector.broadcast %47 : f32 to vector<1x8x128xf32>
      %c0_30 = arith.constant 0 : index
      %c0_31 = arith.constant 0 : index
      %c0_32 = arith.constant 0 : index
      %49 = vector.load %arg4[%c0_30, %c0_31, %c0_32] : memref<1x8x128xf32, #tpu.memory_space<vmem>>, vector<1x8x128xf32>
      tpu.vector_store %arg4[%c0_30, %c0_31, %c0_32], %48 {strides = array<i32>} : memref<1x8x128xf32, #tpu.memory_space<vmem>>, vector<1x8x128xf32>,
    } else {
    }
    return
  }
  func.func @transform_0(%arg0: i32, %arg1: i32) -> (i32, i32) {
    %c0_i32 = arith.constant 0 : i32
    return %arg0, %arg1 : i32, i32
  }
  func.func @transform_1(%arg0: i32, %arg1: i32) -> (i32, i32) {
    %c0_i32 = arith.constant 0 : i32
    %c0_i32_0 = arith.constant 0 : i32
    return %arg0, %c0_i32 : i32, i32
  }
  func.func @transform_2(%arg0: i32, %arg1: i32) -> (i32, i32, i32) {
    %c0_i32 = arith.constant 0 : i32
    %c0_i32_0 = arith.constant 0 : i32
    %c0_i32_1 = arith.constant 0 : i32
    return %arg0, %c0_i32, %c0_i32_0 : i32, i32, i32
  }
}

</mosaic_0001>

<llo_original>
// kernel: tpu_custom_call.1
$region0: #{tpu_custom_call.1}
  #allocation0 [shape = 'u32[]', space=smem, size = 0x4, offset = 0x4, fixed_abs, tag = 'smem constant byte address 0x4 - core index']
  #allocation1 [shape = 'u32[72,128]{1,0:T(1,128)}', space=vmem, size = 0x9000, scoped, tag = 'internal scratch']
  #allocation2 [shape = 'f32[8,1]{1,0:T(8,128)}', space=vmem, size = 0x1000, scoped, tag = 'scratch operand']
  #allocation3 [shape = 'f32[8,1]{1,0:T(8,128)}', space=vmem, size = 0x1000, scoped, tag = 'scratch operand']
  #allocation4 [shape = 'f32[8,1]{1,0:T(8,128)}', space=vmem, size = 0x1000, scoped, tag = 'scratch operand']
  %s0 = inlined_call_operand.vmem [shape: f32[8,32], index: 0, kind: input, shape index: {}]
  %s1 = inlined_call_operand.vmem [shape: s32[8,1], index: 1, kind: input, shape index: {}]
  %s2 = inlined_call_operand.hbm [shape: f32[1,8,128], index: 2, kind: output, shape index: {}]
  %s3 = sld [smem:[#allocation0]]
  $region26: #{tpu_custom_call.1} parent=0
    _
  %s5 = ssub.s32 1, %s3
  %s6 = scalar_select 0, %s5, %s3
  $region1: #{tpu_custom_call.1} parent=0
    #allocation5 [shape = 'u8[4096]{0}', space=vmem, size = 0x1000, scoped, tag = 'output window, operand 0, single buffered']
    #allocation6 [shape = 's32[1]{0}', space=sflag, size = 0x4, scoped, tag = 'scoped memory for tpu_custom_call.1']
    %7 = vsyncpa [#allocation6], 0
    // Predicated region
    $region2: #{tpu_custom_call.1} parent=1 // pred_check
      _
    $region3: #{tpu_custom_call.1} parent=1 // pred_check_branch
      %9 = sbr.rel (0) target = $region5
    $region4: #{tpu_custom_call.1} parent=1 // pred_region
      _
    $region5: #{tpu_custom_call.1} parent=1 // pred_fallthru
      _
    // Predicated region
    $region6: #{tpu_custom_call.1} parent=1 // pred_check
      _
    $region7: #{tpu_custom_call.1} parent=1 // pred_check_branch
      %11 = sbr.rel (0) target = $region9
    $region8: #{tpu_custom_call.1} parent=1 // pred_region
      _
    $region9: #{tpu_custom_call.1} parent=1 // pred_fallthru
      _
    %p12 = scmp.eq.s32.totalorder 0, 0
    // Predicated region
    $region10: #{tpu_custom_call.1} parent=1 // pred_check
      %p13 = pneg %p12
    $region11: #{tpu_custom_call.1} parent=1 // pred_check_branch
      %15 = sbr.rel (%p13) target = $region13
    $region12: #{tpu_custom_call.1} parent=1 // pred_region
      %vm16 = vcmask 7168
      %17 = vst.msk [vmem:[#allocation2] sm:$0xff] %vm16, -1e+30
      %18 = vst.msk [vmem:[#allocation3] sm:$0xff] %vm16, 0.0
      %19 = vst.msk [vmem:[#allocation4] sm:$0xff] %vm16, 0.0
    $region13: #{tpu_custom_call.1} parent=1 // pred_fallthru
      _
    %v20 = vld [vmem:[%s0] sm:$0xff]
    %v21 = vlaneseq
    %v22 = vand.u32 %v21, 127
    %v23 = vld [vmem:[%s1] sm:$0xff]
    %s24 = smul.u32 0, 32
    %v25 = vstv %s24
    %v26 = vsub.s32 %v23, %v25
    %v27 = vld [vmem:[#allocation4] sm:$0xff]
    %28 = vset.pattern.permute.xlu0 0
    %29 = vperm.xlu0 %28, %v26
    %v30 = vpop.permute.xlu0 %29
    %vm31 = vcmp.eq.s32.totalorder %v22, %v30
    %v32 = vsel %vm31, %v20, 0.0
    %vm33 = vcmask 261120
    %v34 = vsel %vm33, %v32, 0.0
    %35 = vadd.xlane.f32.xlu0 %v34
    %v36 = vpop.xlane.xlu0 %35
    %v37 = vadd.f32 %v27, %v36
    %vm38 = vcmask 7168
    %39 = vst.msk [vmem:[#allocation4] sm:$0xff] %vm38, %v37
    %v40 = vld [vmem:[#allocation2] sm:$0xff]
    %v41 = vsel %vm33, %v20, -inf
    %42 = vmax.xlane.f32.xlu0 %v41
    %v43 = vpop.xlane.xlu0 %42
    %v44 = vmax.f32 %v40, %v43
    %v45 = vld [vmem:[#allocation3] sm:$0xff]
    %v46 = vsub.f32 %v40, %v44
    %v47 = vmul.f32 %v46, 1.442695
    %v48 = vpow.pop %v47
    %v49 = vmul.f32 %v45, %v48
    %51 = vset.pattern.permute.xlu0 0
    %52 = vperm.xlu0 %51, %v44
    %v53 = vpop.permute.xlu0 %52
    %v55 = vsub.f32 %v20, %v53
    %v56 = vmul.f32 %v55, 1.442695
    %v57 = vpow.pop %v56
    %v58 = vsel %vm33, %v57, 0.0
    %59 = vadd.xlane.f32.xlu0 %v58
    %v60 = vpop.xlane.xlu0 %59
    %v61 = vadd.f32 %v49, %v60
    %62 = vst.msk [vmem:[#allocation3] sm:$0xff] %vm38, %v61
    %63 = vst.msk [vmem:[#allocation2] sm:$0xff] %vm38, %v44
    // Predicated region
    $region14: #{tpu_custom_call.1} parent=1 // pred_check
      %p64 = pneg %p12
    $region15: #{tpu_custom_call.1} parent=1 // pred_check_branch
      %66 = sbr.rel (%p64) target = $region17
    $region16: #{tpu_custom_call.1} parent=1 // pred_region
      %v67 = vld [vmem:[#allocation2] sm:$0xff]
      %v68 = vld [vmem:[#allocation3] sm:$0xff]
      %v69 = vlog2.pop %v68
      %v70 = vmul.f32 %v69, 0.6931472
      %v71 = vadd.f32 %v67, %v70
      %v72 = vld [vmem:[#allocation4] sm:$0xff]
      %v73 = vsub.f32 %v71, %v72
      %v74 = vsel %vm38, %v73, 0.0
      %75 = vadd.xlane.f32.xlu0 %v74
      %v76 = vpop.xlane.xlu0 %75
      %v77 = vrot.slane %v76, 4
      %v78 = vadd.f32 %v76, %v77
      %v79 = vrot.slane %v78, 2
      %v80 = vadd.f32 %v78, %v79
      %v81 = vrot.slane %v80, 1
      %v82 = vadd.f32 %v80, %v81
      %s83 = vtos %v82
      %v84 = vstv %s83
      %85 = vst [vmem:[#allocation5] sm:$0xff] %v84
    $region17: #{tpu_custom_call.1} parent=1 // pred_fallthru
      _
    // Predicated region
    $region18: #{tpu_custom_call.1} parent=1 // pred_check
      _
    $region19: #{tpu_custom_call.1} parent=1 // pred_check_branch
      %87 = sbr.rel (0) target = $region21
    $region20: #{tpu_custom_call.1} parent=1 // pred_region
      %89 = vsyncadd [#allocation6], 0
      %s91 = sshll.u32 [#allocation5], 4
      %s92 = int_to_ptr.vmem [resolvable:$true] %s91
      %s93 = sshll.u32 %s2, 4
      %s94 = int_to_ptr.hbm [resolvable:$true] %s93
      %96 = dma.vmem_to_hbm [thread:$0]  %s92, 128, %s94, [#allocation6]
    $region21: #{tpu_custom_call.1} parent=1 // pred_fallthru
      _
    // Predicated region
    $region22: #{tpu_custom_call.1} parent=1 // pred_check
      _
    $region23: #{tpu_custom_call.1} parent=1 // pred_check_branch
      %98 = sbr.rel (0) target = $region25
    $region24: #{tpu_custom_call.1} parent=1 // pred_region
      %100 = dma.done [#allocation6], 128
    $region25: #{tpu_custom_call.1} parent=1 // pred_fallthru
      _
    %101 = vsyncpa [#allocation6], 1

</llo_original>
